<compile_context>
chip_gen: v7x
topology: tpu7x:2x2x1
jax: 0.10.0
libtpu: 0.0.40
codegen_flags: <defaults>
</compile_context>

<pallas_src>
import functools
import math

import jax
import jax.numpy as jnp
from jax.experimental import pallas as pl
from jax.experimental.pallas import tpu as pltpu


_MAX_IDS_PER_CALL = 4096          # caps per-call SMEM scalar-prefetch (16 KiB)
_DMA_UNROLL = 8                   # descriptor-issue unroll in the gather loop


def _round_up(x, m):
    return (x + m - 1) // m * m


def _vmem_budget_bytes():
    """Generation-aware VMEM ceiling (v7x: 64 MiB/TC, v5e/v6e: 128 MiB)."""
    cap = None
    try:
        cap = int(getattr(pltpu.get_tpu_info(), "vmem_capacity_bytes", 0))
    except Exception:
        cap = None
    if not cap or cap <= 0:
        cap = 64 * 1024 * 1024                    # conservative: v7x per-TC
    return max(cap - 16 * 1024 * 1024, cap // 2)  # leave Mosaic headroom


def _is_v5():
    try:
        return "v5" in jax.devices()[0].device_kind.lower()
    except Exception:
        return False


# ---------------------------------------------------------------------------
# Path A: VMEM-resident lut, one-hot MXU gather (small vocab).
# ---------------------------------------------------------------------------
def _embed_onehot_kernel(ids_ref, lut_ref, out_ref, *, scale):
    # ids_ref : (T, 1) int32 token ids for this tile
    # lut_ref : (vocab, d_model) full table, resident in VMEM (single buffer)
    # out_ref : (T, d_model) output tile
    ids = ids_ref[...]                                    # (T, 1)
    t = ids.shape[0]
    vocab = lut_ref.shape[0]
    col = jax.lax.broadcasted_iota(jnp.int32, (t, vocab), 1)
    one_hot = (ids == col).astype(lut_ref.dtype)          # (T, vocab)
    rows = jnp.dot(one_hot, lut_ref[...],
                   preferred_element_type=jnp.float32)    # (T, d_model) f32
    out_ref[...] = (rows * scale).astype(out_ref.dtype)


def _onehot_call(ids2d, lut, *, t, scale, budget, single_buffer_lut):
    vocab, d_model = lut.shape
    n_pad = ids2d.shape[0]
    lut_kwargs = {}
    if single_buffer_lut:
        # Constant-index lut block: one resident copy, not two.
        lut_kwargs["pipeline_mode"] = pl.Buffered(1)
    return pl.pallas_call(
        functools.partial(_embed_onehot_kernel, scale=scale),
        out_shape=jax.ShapeDtypeStruct((n_pad, d_model), lut.dtype),
        grid=(n_pad // t,),
        in_specs=[
            pl.BlockSpec((t, 1), lambda i: (i, 0)),               # ids tile
            pl.BlockSpec((vocab, d_model), lambda i: (0, 0),      # resident lut
                         **lut_kwargs),
        ],
        out_specs=pl.BlockSpec((t, d_model), lambda i: (i, 0)),
        compiler_params=pltpu.CompilerParams(
            dimension_semantics=("parallel",),   # independent tiles -> both TCs
            vmem_limit_bytes=budget,
        ),
    )(ids2d, lut)


# ---------------------------------------------------------------------------
# Path B: lut stays in HBM, manual multi-buffered row-gather DMA (large vocab).
# ---------------------------------------------------------------------------
def _embed_dma_kernel(ids_ref, lut_hbm, out_ref, gbuf, sems, *,
                      scale, tile, vocab, nbuf, unroll, tiles_per_split):
    # ids_ref : (n_pad,) int32 in SMEM (scalar prefetch, this chunk only)
    # lut_hbm : (vocab, d_model) ref in HBM (memory_space=pl.ANY)
    # out_ref : (T, d_model) output tile
    # gbuf    : (nbuf, T, d_model) VMEM gather buffer
    # sems    : (nbuf,) DMA semaphores
    c = pl.program_id(0)          # TensorCore split (parallel axis)
    i = pl.program_id(1)          # tile index within this split (arbitrary)

    def start_tile(local_tile, slot):
        base = (c * tiles_per_split + local_tile) * tile

        # Unrolled descriptor issue: SMEM id reads, clamps and DMA pushes
        # co-issue across VLIW slots instead of one serial descriptor/iter.
        @pl.loop(0, tile // unroll)
        def _(grp):
            off = pl.multiple_of(grp * unroll, unroll)
            for u in range(unroll):
                row = off + u
                idx = jnp.clip(ids_ref[base + row], 0, vocab - 1)  # guard OOB DMA
                pltpu.make_async_copy(
                    lut_hbm.at[pl.ds(idx, 1), :],
                    gbuf.at[slot, pl.ds(row, 1), :],
                    sems.at[slot],
                ).start()

    def wait_tile(slot):
        # All `tile` row copies into this slot signal the same DMA semaphore;
        # DMA semaphores count bytes, so a single wait covering the whole
        # (tile, d_model) slot consumes the same total as `tile` row waits.
        pltpu.make_async_copy(gbuf.at[slot], gbuf.at[slot], sems.at[slot]).wait()

    # Prime the pipeline on this core's first step: start (nbuf - 1) tiles.
    @pl.when(i == 0)
    def _():
        for j in range(min(nbuf - 1, tiles_per_split)):
            start_tile(j, j)

    # Keep (nbuf - 1) tiles in flight ahead of the consumer.
    look = i + (nbuf - 1)

    @pl.when(look < tiles_per_split)
    def _():
        start_tile(look, jax.lax.rem(look, nbuf))

    slot = jax.lax.rem(i, nbuf)
    wait_tile(slot)
    rows = gbuf[slot]
    # Scale in the lut dtype (bf16 VALU on v6e/v7x); exact for row gathers.
    out_ref[...] = (rows * jnp.asarray(scale, dtype=rows.dtype)).astype(out_ref.dtype)


def _embed_dma_chunk(chunk_ids, lut, *, t, scale, nbuf, unroll, budget):
    vocab, d_model = lut.shape
    cn = chunk_ids.shape[0]
    num_tiles = -(-cn // t)
    num_splits = 2 if num_tiles >= 2 else 1      # v7x: one token range per TC
    tps = -(-num_tiles // num_splits)            # tiles per split
    n_pad = num_splits * tps * t
    if n_pad != cn:
        chunk_ids = jnp.concatenate(
            [chunk_ids, jnp.zeros((n_pad - cn,), jnp.int32)])

    grid_spec = pltpu.PrefetchScalarGridSpec(
        num_scalar_prefetch=1,
        grid=(num_splits, tps),
        in_specs=[pl.BlockSpec(memory_space=pl.ANY)],          # lut stays in HBM
        out_specs=pl.BlockSpec((t, d_model),
                               lambda c, i, ids: (c * tps + i, 0)),
        scratch_shapes=[
            pltpu.VMEM((nbuf, t, d_model), lut.dtype),
            pltpu.SemaphoreType.DMA((nbuf,)),
        ],
    )
    out = pl.pallas_call(
        functools.partial(_embed_dma_kernel, scale=scale, tile=t, vocab=vocab,
                          nbuf=nbuf, unroll=unroll, tiles_per_split=tps),
        out_shape=jax.ShapeDtypeStruct((n_pad, d_model), lut.dtype),
        grid_spec=grid_spec,
        compiler_params=pltpu.CompilerParams(
            # outer axis: independent token ranges (megacore); inner axis:
            # sequential buffer-carry across tiles.
            dimension_semantics=("parallel", "arbitrary"),
            vmem_limit_bytes=budget,
        ),
    )(chunk_ids, lut)
    return out[:cn]


def _embed_dma(flat, lut, *, t, scale, budget):
    _, d_model = lut.shape
    n = flat.shape[0]
    row_bytes = d_model * lut.dtype.itemsize
    nbuf = 3 if row_bytes < 2048 else 2          # deeper lookahead for tiny rows
    # Wrapper-level chunking keeps the scalar-prefetched id array well inside
    # SMEM regardless of batch*seq length.
    chunk_cap = max(t, (_MAX_IDS_PER_CALL // t) * t)
    outs = []
    for start in range(0, n, chunk_cap):
        outs.append(_embed_dma_chunk(flat[start:start + chunk_cap], lut,
                                     t=t, scale=scale, nbuf=nbuf,
                                     unroll=_DMA_UNROLL, budget=budget))
    return outs[0] if len(outs) == 1 else jnp.concatenate(outs, axis=0)


# ---------------------------------------------------------------------------
# Path selection + wrapper
# ---------------------------------------------------------------------------
def _select_gather(vocab, d_model, dtype, t, budget):
    itemsize = jnp.dtype(dtype).itemsize
    # f32 one-hot matmuls run the multi-pass MXU decomposition -> lower cap;
    # v5e's MXU is ~4.6x slower than v6e/v7x -> halve again.
    cap = 2048 if itemsize <= 2 else 1024
    if _is_v5():
        cap //= 2
    if vocab > cap:
        return "dma"
    lut_bytes = vocab * d_model * itemsize                       # Buffered(1): one copy
    ids_bytes = 2 * t * 128 * 4                                  # (t,1) i32 blocks, lane-padded, x2
    out_bytes = 2 * t * d_model * itemsize                       # output double buffer
    onehot_bytes = t * vocab * (4 + itemsize) + t * d_model * 4  # iota + one-hot + f32 acc
    est = lut_bytes + ids_bytes + out_bytes + onehot_bytes + (2 << 20)
    return "onehot" if est <= budget else "dma"


def embeddings_forward(token_ids, lut, *, gather="auto", tile=256):
    """token_ids: int array (...,); lut: (vocab, d_model). Returns lut[x]*sqrt(d)."""
    vocab, d_model = lut.shape
    scale = float(math.sqrt(d_model))
    budget = _vmem_budget_bytes()

    orig_shape = token_ids.shape
    flat = token_ids.reshape(-1).astype(jnp.int32)
    n = flat.shape[0]
    # Sublane-dense tile (multiple of 16 covers f32 and bf16 outputs).
    t = min(tile, _round_up(max(n, 1), 16))

    if gather == "auto":
        gather = _select_gather(vocab, d_model, lut.dtype, t, budget)

    if gather == "onehot":
        n_pad = _round_up(n, t)
        ids = flat
        if n_pad != n:
            ids = jnp.concatenate([ids, jnp.zeros((n_pad - n,), jnp.int32)])
        ids2d = ids.reshape(n_pad, 1)
        try:
            out_flat = _onehot_call(ids2d, lut, t=t, scale=scale, budget=budget,
                                    single_buffer_lut=True)
        except Exception:
            # TODO(synk): drop this fallback once pl.Buffered(1) single-buffer
            # pipelining is confirmed on every deployed jax version.
            out_flat = _onehot_call(ids2d, lut, t=t, scale=scale, budget=budget,
                                    single_buffer_lut=False)
        out_flat = out_flat[:n]
    else:
        out_flat = _embed_dma(flat, lut, t=t, scale=scale, budget=budget)

    return out_flat.reshape(*orig_shape, d_model)


if __name__ == "__main__":
    # Small, module-consistent shapes.
    batch, seq = 2, 8
    vocab, d_model = 64, 128

    key = jax.random.PRNGKey(0)
    k_lut, k_ids, k_ids_long = jax.random.split(key, 3)

    # Deterministic parameter init (nn.Embedding default ~ N(0,1)).
    lut = jax.random.normal(k_lut, (vocab, d_model), dtype=jnp.float32)
    token_ids = jax.random.randint(k_ids, (batch, seq), 0, vocab, dtype=jnp.int32)
    ref = lut[token_ids] * math.sqrt(d_model)

    # Resident-lut / one-hot MXU path.
    out_onehot = jax.block_until_ready(
        embeddings_forward(token_ids, lut, gather="onehot"))
    assert out_onehot.shape == (batch, seq, d_model)
    assert jnp.allclose(out_onehot, ref, atol=1e-5, rtol=1e-5)

    # HBM + multi-buffered DMA row-gather path (large-vocab strategy).
    out_dma = jax.block_until_ready(
        embeddings_forward(token_ids, lut, gather="dma"))
    assert jnp.allclose(out_dma, ref, atol=1e-5, rtol=1e-5)

    # Default auto selection (onehot at these shapes).
    out_auto = jax.block_until_ready(embeddings_forward(token_ids, lut))
    assert jnp.allclose(out_auto, ref, atol=1e-5, rtol=1e-5)

    # Longer sequence: exercises multi-tile pipelining, 3-deep buffering,
    # the single collapsed wait, and the 2-way TensorCore split of the DMA path.
    long_ids = jax.random.randint(k_ids_long, (batch, 1024), 0, vocab,
                                  dtype=jnp.int32)
    ref_long = lut[long_ids] * math.sqrt(d_model)
    out_long_dma = jax.block_until_ready(
        embeddings_forward(long_ids, lut, gather="dma"))
    assert jnp.allclose(out_long_dma, ref_long, atol=1e-5, rtol=1e-5)
    out_long_auto = jax.block_until_ready(embeddings_forward(long_ids, lut))
    assert jnp.allclose(out_long_auto, ref_long, atol=1e-5, rtol=1e-5)

    # bf16 table: DMA epilogue scales directly in bf16.
    lut_bf16 = lut.astype(jnp.bfloat16)
    ref_bf16 = lut_bf16.astype(jnp.float32)[token_ids] * math.sqrt(d_model)
    out_bf16 = jax.block_until_ready(
        embeddings_forward(token_ids, lut_bf16, gather="dma"))
    assert jnp.allclose(out_bf16.astype(jnp.float32), ref_bf16,
                        atol=1e-2, rtol=1e-2)

    print("KERNEL_OK")
</pallas_src>

<mosaic_0001>
module attributes {stable_mosaic.version = 11 : i64} {
  func.func @_embed_onehot_kernel(%arg0: i32, %arg1: memref<16x1xi32, #tpu.memory_space<vmem>>, %arg2: memref<64x128xf32, #tpu.memory_space<vmem>>, %arg3: memref<16x128xf32, #tpu.memory_space<vmem>>) attributes {dimension_semantics = [#tpu.dimension_semantics<parallel>], iteration_bounds = array<i64: 1>, scalar_prefetch = 0 : i64, scratch_operands = 0 : i64, tpu.core_type = #tpu.core_type<tc>, window_params = [{transform_indices = @transform_0, window_bounds = array<i64: 16, 1>}, {pipeline_mode = #tpu.pipeline_mode<synchronous>, transform_indices = @transform_1, window_bounds = array<i64: 64, 128>}, {transform_indices = @transform_2, window_bounds = array<i64: 16, 128>}]} {
    %c0 = arith.constant 0 : index
    %c0_0 = arith.constant 0 : index
    %0 = vector.load %arg1[%c0, %c0_0] : memref<16x1xi32, #tpu.memory_space<vmem>>, vector<16x1xi32>
    %1 = tpu.iota {dimensions = array<i32: 1>} : vector<16x64xi32>
    %2 = vector.broadcast %0 : vector<16x1xi32> to vector<16x64xi32>
    %3 = arith.cmpi eq, %2, %1 : vector<16x64xi32>
    %4 = arith.extui %3 : vector<16x64xi1> to vector<16x64xi32>
    %5 = arith.sitofp %4 : vector<16x64xi32> to vector<16x64xf32>
    %c0_1 = arith.constant 0 : index
    %c0_2 = arith.constant 0 : index
    %6 = vector.load %arg2[%c0_1, %c0_2] : memref<64x128xf32, #tpu.memory_space<vmem>>, vector<64x128xf32>
    %cst = arith.constant dense<0.000000e+00> : vector<16x128xf32>
    %7 = tpu.matmul %5, %6, %cst {dimension_numbers = #tpu.dot_dimension_numbers<[1], [0], [0], [1], [0, 0, 1, 1], [], []>} : vector<16x64xf32>, vector<64x128xf32>, vector<16x128xf32> -> vector<16x128xf32>
    %cst_3 = arith.constant 11.3137083 : f32
    %8 = vector.broadcast %cst_3 : f32 to vector<16x128xf32>
    %9 = arith.mulf %7, %8 : vector<16x128xf32>
    %c0_4 = arith.constant 0 : index
    %c0_5 = arith.constant 0 : index
    %10 = vector.load %arg3[%c0_4, %c0_5] : memref<16x128xf32, #tpu.memory_space<vmem>>, vector<16x128xf32>
    tpu.vector_store %arg3[%c0_4, %c0_5], %9 {strides = array<i32>} : memref<16x128xf32, #tpu.memory_space<vmem>>, vector<16x128xf32>,
    return
  }
  func.func @transform_0(%arg0: i32) -> (i32, i32) {
    %c0_i32 = arith.constant 0 : i32
    %c0_i32_0 = arith.constant 0 : i32
    return %arg0, %c0_i32 : i32, i32
  }
  func.func @transform_1(%arg0: i32) -> (i32, i32) {
    %c0_i32 = arith.constant 0 : i32
    %c0_i32_0 = arith.constant 0 : i32
    %c0_i32_1 = arith.constant 0 : i32
    return %c0_i32, %c0_i32_0 : i32, i32
  }
  func.func @transform_2(%arg0: i32) -> (i32, i32) {
    %c0_i32 = arith.constant 0 : i32
    %c0_i32_0 = arith.constant 0 : i32
    return %arg0, %c0_i32 : i32, i32
  }
}

module attributes {stable_mosaic.version = 11 : i64} {
  func.func @_embed_onehot_kernel(%arg0: i32, %arg1: memref<16x1xi32, #tpu.memory_space<vmem>>, %arg2: memref<64x128xf32, #tpu.memory_space<vmem>>, %arg3: memref<16x128xf32, #tpu.memory_space<vmem>>) attributes {dimension_semantics = [#tpu.dimension_semantics<parallel>], iteration_bounds = array<i64: 1>, scalar_prefetch = 0 : i64, scratch_operands = 0 : i64, tpu.core_type = #tpu.core_type<tc>, window_params = [{transform_indices = @transform_0, window_bounds = array<i64: 16, 1>}, {pipeline_mode = #tpu.pipeline_mode<synchronous>, transform_indices = @transform_1, window_bounds = array<i64: 64, 128>}, {transform_indices = @transform_2, window_bounds = array<i64: 16, 128>}]} {
    %c0 = arith.constant 0 : index
    %c0_0 = arith.constant 0 : index
    %0 = vector.load %arg1[%c0, %c0_0] : memref<16x1xi32, #tpu.memory_space<vmem>>, vector<16x1xi32>
    %1 = tpu.iota {dimensions = array<i32: 1>} : vector<16x64xi32>
    %2 = vector.broadcast %0 : vector<16x1xi32> to vector<16x64xi32>
    %3 = arith.cmpi eq, %2, %1 : vector<16x64xi32>
    %4 = arith.extui %3 : vector<16x64xi1> to vector<16x64xi32>
    %5 = arith.sitofp %4 : vector<16x64xi32> to vector<16x64xf32>
    %c0_1 = arith.constant 0 : index
    %c0_2 = arith.constant 0 : index
    %6 = vector.load %arg2[%c0_1, %c0_2] : memref<64x128xf32, #tpu.memory_space<vmem>>, vector<64x128xf32>
    %cst = arith.constant dense<0.000000e+00> : vector<16x128xf32>
    %7 = tpu.matmul %5, %6, %cst {dimension_numbers = #tpu.dot_dimension_numbers<[1], [0], [0], [1], [0, 0, 1, 1], [], []>} : vector<16x64xf32>, vector<64x128xf32>, vector<16x128xf32> -> vector<16x128xf32>
    %cst_3 = arith.constant 11.3137083 : f32
    %8 = vector.broadcast %cst_3 : f32 to vector<16x128xf32>
    %9 = arith.mulf %7, %8 : vector<16x128xf32>
    %c0_4 = arith.constant 0 : index
    %c0_5 = arith.constant 0 : index
    %10 = vector.load %arg3[%c0_4, %c0_5] : memref<16x128xf32, #tpu.memory_space<vmem>>, vector<16x128xf32>
    tpu.vector_store %arg3[%c0_4, %c0_5], %9 {strides = array<i32>} : memref<16x128xf32, #tpu.memory_space<vmem>>, vector<16x128xf32>,
    return
  }
  func.func @transform_0(%arg0: i32) -> (i32, i32) {
    %c0_i32 = arith.constant 0 : i32
    %c0_i32_0 = arith.constant 0 : i32
    return %arg0, %c0_i32 : i32, i32
  }
  func.func @transform_1(%arg0: i32) -> (i32, i32) {
    %c0_i32 = arith.constant 0 : i32
    %c0_i32_0 = arith.constant 0 : i32
    %c0_i32_1 = arith.constant 0 : i32
    return %c0_i32, %c0_i32_0 : i32, i32
  }
  func.func @transform_2(%arg0: i32) -> (i32, i32) {
    %c0_i32 = arith.constant 0 : i32
    %c0_i32_0 = arith.constant 0 : i32
    return %arg0, %c0_i32 : i32, i32
  }
}

</mosaic_0001>

<llo_original>
// kernel: tpu_custom_call.1
$region0: #{tpu_custom_call.1}
  #allocation0 [shape = 'u32[]', space=smem, size = 0x4, offset = 0x4, fixed_abs, tag = 'smem constant byte address 0x4 - core index']
  #allocation1 [shape = 'u32[144,128]{1,0:T(1,128)}', space=vmem, size = 0x12000, scoped, tag = 'internal scratch']
  %s0 = inlined_call_operand.vmem [shape: s32[16,1], index: 0, kind: input, shape index: {}]
  %s1 = inlined_call_operand.hbm [shape: f32[64,128], index: 1, kind: input, shape index: {}]
  %s2 = inlined_call_operand.hbm [shape: f32[16,128], index: 2, kind: output, shape index: {}]
  %s3 = sld [smem:[#allocation0]]
  $region22: #{tpu_custom_call.1} parent=0
    _
  %s5 = ssub.s32 1, %s3
  %s6 = scalar_select 0, %s5, %s3
  $region1: #{tpu_custom_call.1} parent=0
    #allocation2 [shape = 'u8[32768]{0}', space=vmem, size = 0x8000, scoped, tag = 'input window, operand 1, single buffered']
    #allocation3 [shape = 's32[1]{0}', space=sflag, size = 0x4, scoped, tag = 'scoped memory for tpu_custom_call.1']
    #allocation4 [shape = 's32[1]{0}', space=sflag, size = 0x4, scoped, tag = 'scoped memory for tpu_custom_call.1']
    #allocation5 [shape = 'u8[8192]{0}', space=vmem, size = 0x2000, scoped, tag = 'output window, operand 0, single buffered']
    %7 = vsyncpa [#allocation3], 0
    %8 = vsyncpa [#allocation4], 0
    // Predicated region
    $region2: #{tpu_custom_call.1} parent=1 // pred_check
      _
    $region3: #{tpu_custom_call.1} parent=1 // pred_check_branch
      %10 = sbr.rel (0) target = $region5
    $region4: #{tpu_custom_call.1} parent=1 // pred_region
      _
    $region5: #{tpu_custom_call.1} parent=1 // pred_fallthru
      _
    // Predicated region
    $region6: #{tpu_custom_call.1} parent=1 // pred_check
      _
    $region7: #{tpu_custom_call.1} parent=1 // pred_check_branch
      %12 = sbr.rel (0) target = $region9
    $region8: #{tpu_custom_call.1} parent=1 // pred_region
      %s14 = ssub.s32 1024, 1024
      %15 = vsyncadd [#allocation3], %s14
      %s16 = sshll.u32 [#allocation2], 4
      %s17 = int_to_ptr.vmem [resolvable:$true] %s16
      %22 = dma.hbm_to_vmem [thread:$0]  %s1, 1024, %s17, [#allocation3], 128, 128, 8
    $region9: #{tpu_custom_call.1} parent=1 // pred_fallthru
      _
    // Predicated region
    $region10: #{tpu_custom_call.1} parent=1 // pred_check
      _
    $region11: #{tpu_custom_call.1} parent=1 // pred_check_branch
      %24 = sbr.rel (0) target = $region13
    $region12: #{tpu_custom_call.1} parent=1 // pred_region
      %25 = dma.done [#allocation3], 1024
    $region13: #{tpu_custom_call.1} parent=1 // pred_fallthru
      _
    %v26 = vld [vmem:[%s0] sm:$0xff]
    %v27 = vld [vmem:[%s0 + $0x8] sm:$0xff]
    %v28 = vlaneseq
    %v29 = vand.u32 %v28, 127
    %30 = vset.pattern.permute.xlu0 0
    %31 = vperm.xlu0 %30, %v26
    %v32 = vpop.permute.xlu0 %31
    %33 = vset.pattern.permute.xlu0 0
    %34 = vperm.xlu0 %33, %v27
    %v35 = vpop.permute.xlu0 %34
    %vm36 = vcmp.eq.s32.totalorder %v32, %v29
    %vm37 = vcmp.eq.s32.totalorder %v35, %v29
    %v38 = vsel %vm36, 1, 0
    %v39 = vsel %vm37, 1, 0
    %v40 = vcvt.s32.f32 %v38
    %v41 = vcvt.s32.f32 %v39
    %v42 = vld [vmem:[#allocation2] sm:$0xff]
    %v43 = vld [vmem:[#allocation2 + $0x8] sm:$0xff]
    %v44 = vld [vmem:[#allocation2 + $0x10] sm:$0xff]
    %v45 = vld [vmem:[#allocation2 + $0x18] sm:$0xff]
    %v46 = vld [vmem:[#allocation2 + $0x20] sm:$0xff]
    %v47 = vld [vmem:[#allocation2 + $0x28] sm:$0xff]
    %v48 = vld [vmem:[#allocation2 + $0x30] sm:$0xff]
    %v49 = vld [vmem:[#allocation2 + $0x38] sm:$0xff]
    %vm50 = vcmask 523264
    %v52 = vsel %vm50, %v40, 0
    %v55 = vsel %vm50, %v41, 0
    %57 = vmatprep.subr.mxu0 0.0
    %58 = vmatpush1.msra.mxu0 %v42
    %59 = vmatprep.subr.mxu0 0.0
    %60 = vmatpush1.msra.mxu0 %v43
    %61 = vmatprep.subr.mxu0 0.0
    %62 = vmatpush1.msra.mxu0 %v44
    %63 = vmatprep.subr.mxu0 0.0
    %64 = vmatpush1.msra.mxu0 %v45
    %65 = vmatprep.subr.mxu0 0.0
    %66 = vmatpush1.msra.mxu0 %v46
    %67 = vmatprep.subr.mxu0 0.0
    %68 = vmatpush1.msra.mxu0 %v47
    %69 = vmatprep.subr.mxu0 0.0
    %70 = vmatpush1.msra.mxu0 %v48
    %71 = vmatprep.subr.mxu0 0.0
    %72 = vmatpush1.msra.mxu0 %v49
    %73 = vmatprep.subr.mxu0 0.0
    %74 = vmatpush1.msra.mxu0 0.0
    %75 = vmatprep.subr.mxu0 0.0
    %76 = vmatpush1.msra.mxu0 0.0
    %77 = vmatprep.subr.mxu0 0.0
    %78 = vmatpush1.msra.mxu0 0.0
    %79 = vmatprep.subr.mxu0 0.0
    %80 = vmatpush1.msra.mxu0 0.0
    %81 = vmatprep.subr.mxu0 0.0
    %82 = vmatpush1.msra.mxu0 0.0
    %83 = vmatprep.subr.mxu0 0.0
    %84 = vmatpush1.msra.mxu0 0.0
    %85 = vmatprep.subr.mxu0 0.0
    %86 = vmatpush1.msra.mxu0 0.0
    %87 = vmatprep.subr.mxu0 0.0
    %88 = vmatpush1.msra.mxu0 0.0
    %89 = vmatprep.subr.mxu0 0.0
    %90 = vmatpush1.msra.mxu0 0.0
    %91 = vmatprep.subr.mxu0 0.0
    %92 = vmatpush1.msra.mxu0 0.0
    %93 = vmatprep.subr.mxu0 0.0
    %94 = vmatpush1.msra.mxu0 0.0
    %95 = vmatprep.subr.mxu0 0.0
    %96 = vmatpush1.msra.mxu0 0.0
    %97 = vmatprep.subr.mxu0 0.0
    %98 = vmatpush1.msra.mxu0 0.0
    %99 = vmatprep.subr.mxu0 0.0
    %100 = vmatpush1.msra.mxu0 0.0
    %101 = vmatprep.subr.mxu0 0.0
    %102 = vmatpush1.msra.mxu0 0.0
    %103 = vmatprep.subr.mxu0 0.0
    %104 = vmatpush1.msra.mxu0 0.0
    %105 = vmatprep.subr.mxu0 0.0
    %106 = vmatpush1.msra.mxu0 0.0
    %107 = vmatprep.subr.mxu0 0.0
    %108 = vmatpush1.msra.mxu0 0.0
    %109 = vmatprep.subr.mxu0 0.0
    %110 = vmatpush1.msra.mxu0 0.0
    %111 = vmatprep.subr.mxu0 0.0
    %112 = vmatpush1.msra.mxu0 0.0
    %113 = vmatprep.subr.mxu0 0.0
    %114 = vmatpush1.msra.mxu0 0.0
    %115 = vmatprep.subr.mxu0 0.0
    %116 = vmatpush1.msra.mxu0 0.0
    %117 = vmatprep.subr.mxu0 0.0
    %118 = vmatpush1.msra.mxu0 0.0
    %119 = vmatprep.subr.mxu0 0.0
    %120 = vmatpush1.msra.mxu0 0.0
    %121 = vmatprep.mubr.f32.mxu0 0.0
    %122 = vmatmul.mubr.f32.gmra.mrb[0].mxu0 %v52
    %v123 = vpop.f32.mrb[0].mxu0
    %v124 = vadd.f32 0.0, %v123
    %v125 = vpop.f32.mrb[0].mxu0
    %126 = vmatprep.mubr.f32.mxu0 0.0
    %127 = vmatmul.mubr.f32.gmra.mrb[0].mxu0 %v55
    %v128 = vpop.f32.mrb[0].mxu0
    %v129 = vadd.f32 0.0, %v128
    %v130 = vpop.f32.mrb[0].mxu0
    %131 = vdwg.mxu0
    %v132 = vmul.f32 %v124, 11.313708
    %v133 = vmul.f32 %v129, 11.313708
    %134 = vst [vmem:[#allocation5] sm:$0xff] %v132
    %135 = vst [vmem:[#allocation5 + $0x8] sm:$0xff] %v133
    // Predicated region
    $region14: #{tpu_custom_call.1} parent=1 // pred_check
      _
    $region15: #{tpu_custom_call.1} parent=1 // pred_check_branch
      %137 = sbr.rel (0) target = $region17
    $region16: #{tpu_custom_call.1} parent=1 // pred_region
      %s139 = ssub.s32 256, 256
      %140 = vsyncadd [#allocation4], %s139
      %s141 = sshll.u32 [#allocation5], 4
      %s142 = int_to_ptr.vmem [resolvable:$true] %s141
      %147 = dma.vmem_to_hbm [thread:$0]  %s142, 256, %s2, [#allocation4], 128, 128, 8
    $region17: #{tpu_custom_call.1} parent=1 // pred_fallthru
      _
    // Predicated region
    $region18: #{tpu_custom_call.1} parent=1 // pred_check
      _
    $region19: #{tpu_custom_call.1} parent=1 // pred_check_branch
      %149 = sbr.rel (0) target = $region21
    $region20: #{tpu_custom_call.1} parent=1 // pred_region
      %150 = dma.done [#allocation4], 256
    $region21: #{tpu_custom_call.1} parent=1 // pred_fallthru
      _
    %151 = vsyncpa [#allocation3], 1
    %152 = vsyncpa [#allocation4], 1

// kernel: tpu_custom_call.1
$region0: #{tpu_custom_call.1}
  #allocation0 [shape = 'u32[]', space=smem, size = 0x4, offset = 0x4, fixed_abs, tag = 'smem constant byte address 0x4 - core index']
  #allocation1 [shape = 'u32[144,128]{1,0:T(1,128)}', space=vmem, size = 0x12000, scoped, tag = 'internal scratch']
  %s0 = inlined_call_operand.vmem [shape: s32[16,1], index: 0, kind: input, shape index: {}]
  %s1 = inlined_call_operand.hbm [shape: f32[64,128], index: 1, kind: input, shape index: {}]
  %s2 = inlined_call_operand.hbm [shape: f32[16,128], index: 2, kind: output, shape index: {}]
  %s3 = sld [smem:[#allocation0]]
  $region22: #{tpu_custom_call.1} parent=0
    _
  %s5 = ssub.s32 1, %s3
  %s6 = scalar_select 0, %s5, %s3
  $region1: #{tpu_custom_call.1} parent=0
    #allocation2 [shape = 'u8[32768]{0}', space=vmem, size = 0x8000, scoped, tag = 'input window, operand 1, single buffered']
    #allocation3 [shape = 's32[1]{0}', space=sflag, size = 0x4, scoped, tag = 'scoped memory for tpu_custom_call.1']
    #allocation4 [shape = 's32[1]{0}', space=sflag, size = 0x4, scoped, tag = 'scoped memory for tpu_custom_call.1']
    #allocation5 [shape = 'u8[8192]{0}', space=vmem, size = 0x2000, scoped, tag = 'output window, operand 0, single buffered']
    %7 = vsyncpa [#allocation3], 0
    %8 = vsyncpa [#allocation4], 0
    // Predicated region
    $region2: #{tpu_custom_call.1} parent=1 // pred_check
      _
    $region3: #{tpu_custom_call.1} parent=1 // pred_check_branch
      %10 = sbr.rel (0) target = $region5
    $region4: #{tpu_custom_call.1} parent=1 // pred_region
      _
    $region5: #{tpu_custom_call.1} parent=1 // pred_fallthru
      _
    // Predicated region
    $region6: #{tpu_custom_call.1} parent=1 // pred_check
      _
    $region7: #{tpu_custom_call.1} parent=1 // pred_check_branch
      %12 = sbr.rel (0) target = $region9
    $region8: #{tpu_custom_call.1} parent=1 // pred_region
      %s14 = ssub.s32 1024, 1024
      %15 = vsyncadd [#allocation3], %s14
      %s16 = sshll.u32 [#allocation2], 4
      %s17 = int_to_ptr.vmem [resolvable:$true] %s16
      %22 = dma.hbm_to_vmem [thread:$0]  %s1, 1024, %s17, [#allocation3], 128, 128, 8
    $region9: #{tpu_custom_call.1} parent=1 // pred_fallthru
      _
    // Predicated region
    $region10: #{tpu_custom_call.1} parent=1 // pred_check
      _
    $region11: #{tpu_custom_call.1} parent=1 // pred_check_branch
      %24 = sbr.rel (0) target = $region13
    $region12: #{tpu_custom_call.1} parent=1 // pred_region
      %25 = dma.done [#allocation3], 1024
    $region13: #{tpu_custom_call.1} parent=1 // pred_fallthru
      _
    %v26 = vld [vmem:[%s0] sm:$0xff]
    %v27 = vld [vmem:[%s0 + $0x8] sm:$0xff]
    %v28 = vlaneseq
    %v29 = vand.u32 %v28, 127
    %30 = vset.pattern.permute.xlu0 0
    %31 = vperm.xlu0 %30, %v26
    %v32 = vpop.permute.xlu0 %31
    %33 = vset.pattern.permute.xlu0 0
    %34 = vperm.xlu0 %33, %v27
    %v35 = vpop.permute.xlu0 %34
    %vm36 = vcmp.eq.s32.totalorder %v32, %v29
    %vm37 = vcmp.eq.s32.totalorder %v35, %v29
    %v38 = vsel %vm36, 1, 0
    %v39 = vsel %vm37, 1, 0
    %v40 = vcvt.s32.f32 %v38
    %v41 = vcvt.s32.f32 %v39
    %v42 = vld [vmem:[#allocation2] sm:$0xff]
    %v43 = vld [vmem:[#allocation2 + $0x8] sm:$0xff]
    %v44 = vld [vmem:[#allocation2 + $0x10] sm:$0xff]
    %v45 = vld [vmem:[#allocation2 + $0x18] sm:$0xff]
    %v46 = vld [vmem:[#allocation2 + $0x20] sm:$0xff]
    %v47 = vld [vmem:[#allocation2 + $0x28] sm:$0xff]
    %v48 = vld [vmem:[#allocation2 + $0x30] sm:$0xff]
    %v49 = vld [vmem:[#allocation2 + $0x38] sm:$0xff]
    %vm50 = vcmask 523264
    %v52 = vsel %vm50, %v40, 0
    %v55 = vsel %vm50, %v41, 0
    %57 = vmatprep.subr.mxu0 0.0
    %58 = vmatpush1.msra.mxu0 %v42
    %59 = vmatprep.subr.mxu0 0.0
    %60 = vmatpush1.msra.mxu0 %v43
    %61 = vmatprep.subr.mxu0 0.0
    %62 = vmatpush1.msra.mxu0 %v44
    %63 = vmatprep.subr.mxu0 0.0
    %64 = vmatpush1.msra.mxu0 %v45
    %65 = vmatprep.subr.mxu0 0.0
    %66 = vmatpush1.msra.mxu0 %v46
    %67 = vmatprep.subr.mxu0 0.0
    %68 = vmatpush1.msra.mxu0 %v47
    %69 = vmatprep.subr.mxu0 0.0
    %70 = vmatpush1.msra.mxu0 %v48
    %71 = vmatprep.subr.mxu0 0.0
    %72 = vmatpush1.msra.mxu0 %v49
    %73 = vmatprep.subr.mxu0 0.0
    %74 = vmatpush1.msra.mxu0 0.0
    %75 = vmatprep.subr.mxu0 0.0
    %76 = vmatpush1.msra.mxu0 0.0
    %77 = vmatprep.subr.mxu0 0.0
    %78 = vmatpush1.msra.mxu0 0.0
    %79 = vmatprep.subr.mxu0 0.0
    %80 = vmatpush1.msra.mxu0 0.0
    %81 = vmatprep.subr.mxu0 0.0
    %82 = vmatpush1.msra.mxu0 0.0
    %83 = vmatprep.subr.mxu0 0.0
    %84 = vmatpush1.msra.mxu0 0.0
    %85 = vmatprep.subr.mxu0 0.0
    %86 = vmatpush1.msra.mxu0 0.0
    %87 = vmatprep.subr.mxu0 0.0
    %88 = vmatpush1.msra.mxu0 0.0
    %89 = vmatprep.subr.mxu0 0.0
    %90 = vmatpush1.msra.mxu0 0.0
    %91 = vmatprep.subr.mxu0 0.0
    %92 = vmatpush1.msra.mxu0 0.0
    %93 = vmatprep.subr.mxu0 0.0
    %94 = vmatpush1.msra.mxu0 0.0
    %95 = vmatprep.subr.mxu0 0.0
    %96 = vmatpush1.msra.mxu0 0.0
    %97 = vmatprep.subr.mxu0 0.0
    %98 = vmatpush1.msra.mxu0 0.0
    %99 = vmatprep.subr.mxu0 0.0
    %100 = vmatpush1.msra.mxu0 0.0
    %101 = vmatprep.subr.mxu0 0.0
    %102 = vmatpush1.msra.mxu0 0.0
    %103 = vmatprep.subr.mxu0 0.0
    %104 = vmatpush1.msra.mxu0 0.0
    %105 = vmatprep.subr.mxu0 0.0
    %106 = vmatpush1.msra.mxu0 0.0
    %107 = vmatprep.subr.mxu0 0.0
    %108 = vmatpush1.msra.mxu0 0.0
    %109 = vmatprep.subr.mxu0 0.0
    %110 = vmatpush1.msra.mxu0 0.0
    %111 = vmatprep.subr.mxu0 0.0
    %112 = vmatpush1.msra.mxu0 0.0
    %113 = vmatprep.subr.mxu0 0.0
    %114 = vmatpush1.msra.mxu0 0.0
    %115 = vmatprep.subr.mxu0 0.0
    %116 = vmatpush1.msra.mxu0 0.0
    %117 = vmatprep.subr.mxu0 0.0
    %118 = vmatpush1.msra.mxu0 0.0
    %119 = vmatprep.subr.mxu0 0.0
    %120 = vmatpush1.msra.mxu0 0.0
    %121 = vmatprep.mubr.f32.mxu0 0.0
    %122 = vmatmul.mubr.f32.gmra.mrb[0].mxu0 %v52
    %v123 = vpop.f32.mrb[0].mxu0
    %v124 = vadd.f32 0.0, %v123
    %v125 = vpop.f32.mrb[0].mxu0
    %126 = vmatprep.mubr.f32.mxu0 0.0
    %127 = vmatmul.mubr.f32.gmra.mrb[0].mxu0 %v55
    %v128 = vpop.f32.mrb[0].mxu0
    %v129 = vadd.f32 0.0, %v128
    %v130 = vpop.f32.mrb[0].mxu0
    %131 = vdwg.mxu0
    %v132 = vmul.f32 %v124, 11.313708
    %v133 = vmul.f32 %v129, 11.313708
    %134 = vst [vmem:[#allocation5] sm:$0xff] %v132
    %135 = vst [vmem:[#allocation5 + $0x8] sm:$0xff] %v133
    // Predicated region
    $region14: #{tpu_custom_call.1} parent=1 // pred_check
      _
    $region15: #{tpu_custom_call.1} parent=1 // pred_check_branch
      %137 = sbr.rel (0) target = $region17
    $region16: #{tpu_custom_call.1} parent=1 // pred_region
      %s139 = ssub.s32 256, 256
      %140 = vsyncadd [#allocation4], %s139
      %s141 = sshll.u32 [#allocation5], 4
      %s142 = int_to_ptr.vmem [resolvable:$true] %s141
      %147 = dma.vmem_to_hbm [thread:$0]  %s142, 256, %s2, [#allocation4], 128, 128, 8
    $region17: #{tpu_custom_call.1} parent=1 // pred_fallthru
      _
    // Predicated region
    $region18: #{tpu_custom_call.1} parent=1 // pred_check
      _
    $region19: #{tpu_custom_call.1} parent=1 // pred_check_branch
      %149 = sbr.rel (0) target = $region21
    $region20: #{tpu_custom_call.1} parent=1 // pred_region
      %150 = dma.done [#allocation4], 256
    $region21: #{tpu_custom_call.1} parent=1 // pred_fallthru
      _
    %151 = vsyncpa [#allocation3], 1
    %152 = vsyncpa [#allocation4], 1

</llo_original>
